<compile_context>
chip_gen: v7x
topology: tpu7x:2x2x1
jax: 0.10.0
libtpu: 0.0.40
codegen_flags: <defaults>
</compile_context>

<pallas_src>
import functools
import math

import jax
import jax.numpy as jnp
from jax.experimental import pallas as pl
from jax.experimental.pallas import tpu as pltpu

_TARGET_BLOCK_BYTES = 4 * 1024 * 1024      # ~4 MiB blocks for the mem-bound kernels
_VMEM_LIMIT_BYTES = 48 * 1024 * 1024       # explicit scoped-VMEM limit (fits v7x 64MiB)
_HIGHEST = jax.lax.Precision.HIGHEST


def _row_tile(nrows, row_bytes, target_bytes=_TARGET_BLOCK_BYTES):
    """Rows per block: whole array if it fits the target, else a multiple of 8."""
    cap = max(1, target_bytes // max(1, row_bytes))
    if nrows <= cap:
        return nrows, 1                      # single full-extent block
    tr = max(8, (cap // 8) * 8)              # multiple of 8 (sublane rule), near target
    # TODO(synk): for very large H*W (row_bytes*8 >> VMEM) the lane axis would also
    # need tiling; not needed for typical feature-map sizes.
    return tr, pl.cdiv(nrows, tr)            # ragged last block handled by Pallas


# ---------------------------------------------------------------------------
# Kernel 1: AdaptiveAvgPool2d((None, 1))  ==  per-(n,c,h) mean over W.
#   x2d: (N*C, H*W) lane-dense view;  avg: (H*W, H) block-averaging matrix (1/W).
# ---------------------------------------------------------------------------
def _wmean_kernel(x_ref, a_ref, o_ref):
    o_ref[...] = jnp.dot(x_ref[...], a_ref[...],
                         preferred_element_type=jnp.float32,
                         precision=_HIGHEST)


def width_mean(x2d, avg):
    NC, HW = x2d.shape
    H = avg.shape[1]
    tr, grid = _row_tile(NC, HW * 4)
    return pl.pallas_call(
        _wmean_kernel,
        out_shape=jax.ShapeDtypeStruct((NC, H), jnp.float32),
        grid=(grid,),
        in_specs=[pl.BlockSpec((tr, HW), lambda i: (i, 0)),
                  pl.BlockSpec((HW, H), lambda i: (0, 0))],
        out_specs=pl.BlockSpec((tr, H), lambda i: (i, 0)),
        compiler_params=pltpu.CompilerParams(
            dimension_semantics=("parallel",),
            vmem_limit_bytes=_VMEM_LIMIT_BYTES),
    )(x2d, avg)


# ---------------------------------------------------------------------------
# Kernel 2: fused conv1(3x1) -> BN1 (train-mode batch stats) -> ReLU ->
#           conv3(1x1, bias) -> sigmoid (+1 folded) on the pooled tensor.
#   cols: (N*H, 3*C) im2col (over H) of the pooled tensor.
# ---------------------------------------------------------------------------
def _chain_kernel(cols_ref, w1_ref, g_ref, b_ref, w3_ref, b3_ref, o_ref, *, eps):
    y = jnp.dot(cols_ref[...], w1_ref[...],
                preferred_element_type=jnp.float32, precision=_HIGHEST)
    # BatchNorm2d (training mode): biased batch statistics over (N, H, W=1),
    # two-pass variance for numerical stability.
    # TODO(synk): PyTorch eval() would use running_mean/running_var instead.
    mean = jnp.mean(y, axis=0, keepdims=True)
    var = jnp.mean((y - mean) ** 2, axis=0, keepdims=True)
    scale = g_ref[...] * jax.lax.rsqrt(var + eps)
    shift = b_ref[...] - mean * scale
    y = jnp.maximum(y * scale + shift, 0.0)                       # BN + ReLU fused
    z = jnp.dot(y, w3_ref[...],
                preferred_element_type=jnp.float32, precision=_HIGHEST) + b3_ref[...]
    # '+1' of (weight * x + x) folded here so the full-size gate is a single vmul.
    o_ref[...] = jax.nn.sigmoid(z) + 1.0


def weight_chain(cols, w1m, gamma, beta, w3m, b3, eps=1e-5):
    R, K = cols.shape
    Cmid = w1m.shape[1]
    Cout = w3m.shape[1]
    # The pooled tensor is ~1/W the size of x; BN needs global batch statistics,
    # so one VMEM-resident block is both simplest and fastest.
    # TODO(synk): for very large N*H, tile R with a two-pass BN (sum/sumsq scratch).
    return pl.pallas_call(
        functools.partial(_chain_kernel, eps=eps),
        out_shape=jax.ShapeDtypeStruct((R, Cout), jnp.float32),
        grid=(1,),
        in_specs=[
            pl.BlockSpec((R, K), lambda i: (0, 0)),
            pl.BlockSpec((K, Cmid), lambda i: (0, 0)),
            pl.BlockSpec((1, Cmid), lambda i: (0, 0)),
            pl.BlockSpec((1, Cmid), lambda i: (0, 0)),
            pl.BlockSpec((Cmid, Cout), lambda i: (0, 0)),
            pl.BlockSpec((1, Cout), lambda i: (0, 0)),
        ],
        out_specs=pl.BlockSpec((R, Cout), lambda i: (0, 0)),
    )(cols, w1m, gamma.reshape(1, Cmid), beta.reshape(1, Cmid),
      w3m, b3.reshape(1, Cout))


# ---------------------------------------------------------------------------
# Kernel 3: out = x * (sigmoid(..)+1), width broadcast done inside the kernel.
#   x2d: (N*C, H*W), w2d: (N*C, H), bcast: (H, H*W) exact 0/1 expansion matrix.
# ---------------------------------------------------------------------------
def _gate_kernel(w_ref, b_ref, x_ref, o_ref):
    w_exp = jnp.dot(w_ref[...], b_ref[...],
                    preferred_element_type=jnp.float32, precision=_HIGHEST)
    o_ref[...] = x_ref[...] * w_exp


def gate(x2d, w2d, bcast):
    NC, HW = x2d.shape
    H = w2d.shape[1]
    tr, grid = _row_tile(NC, HW * 4)
    return pl.pallas_call(
        _gate_kernel,
        out_shape=jax.ShapeDtypeStruct((NC, HW), jnp.float32),
        grid=(grid,),
        in_specs=[pl.BlockSpec((tr, H), lambda i: (i, 0)),
                  pl.BlockSpec((H, HW), lambda i: (0, 0)),
                  pl.BlockSpec((tr, HW), lambda i: (i, 0))],
        out_specs=pl.BlockSpec((tr, HW), lambda i: (i, 0)),
        compiler_params=pltpu.CompilerParams(
            dimension_semantics=("parallel",),
            vmem_limit_bytes=_VMEM_LIMIT_BYTES),
    )(w2d, bcast, x2d)


# ---------------------------------------------------------------------------
# Pool_x forward (NCHW in, NCHW out)
# ---------------------------------------------------------------------------
def pool_x_forward(p, x_nchw, eps=1e-5):
    x = x_nchw.astype(jnp.float32)
    N, C, H, W = x.shape
    w1 = p["conv1_w"]                    # (Cmid, C, 3, 1)
    w3 = p["conv3_w"]                    # (Cout, Cmid, 1, 1)
    Cmid, Cout = w1.shape[0], w3.shape[0]
    assert Cout == C, "gating requires outplanes == input channels"

    x2d = x.reshape(N * C, H * W)                               # contiguous view

    # Tiny constant matrices: (H, H*W) 0/1 width-broadcast, and its scaled
    # transpose (H*W, H) as the block-averaging matrix.
    bcast = jnp.kron(jnp.eye(H, dtype=jnp.float32),
                     jnp.ones((1, W), jnp.float32))             # (H, H*W)
    avg = jnp.transpose(bcast) * (1.0 / float(W))               # (H*W, H)

    # 1) AdaptiveAvgPool2d((None, 1)) as a lane-dense matmul-mean.
    xm = width_mean(x2d, avg)                                   # (N*C, H)

    # im2col over H for the (3,1) conv on the tiny pooled tensor (JAX glue).
    xm_nhc = jnp.transpose(xm.reshape(N, C, H), (0, 2, 1))      # (N, H, C)
    xm_pad = jnp.pad(xm_nhc, ((0, 0), (1, 1), (0, 0)))          # zero padding (1,0)
    cols = jnp.concatenate([xm_pad[:, d:d + H, :] for d in range(3)], axis=-1)
    cols = cols.reshape(N * H, 3 * C)                           # (dh, ci) ordering
    w1m = jnp.transpose(w1[:, :, :, 0], (2, 1, 0)).reshape(3 * C, Cmid)
    w3m = jnp.transpose(w3[:, :, 0, 0], (1, 0))                 # (Cmid, Cout)

    # 2) conv1 -> BN -> ReLU -> conv3 -> sigmoid (+1), fused, un-expanded.
    wsmall = weight_chain(cols, w1m, p["bn1_w"], p["bn1_b"], w3m, p["conv3_b"], eps)
    # tiny (N*H, Cout) -> (N*Cout, H) rearrangement to line up with x2d rows.
    wrow = jnp.transpose(wsmall.reshape(N, H, Cout), (0, 2, 1)).reshape(N * Cout, H)

    # 3) out = x * (sigmoid + 1)  (broadcast over W inside the kernel).
    out2d = gate(x2d, wrow, bcast)
    return out2d.reshape(N, C, H, W)


# ---------------------------------------------------------------------------
# Deterministic parameter init (PyTorch-style uniform(+-1/sqrt(fan_in)))
# ---------------------------------------------------------------------------
def init_params(seed=42, inplanes=16, outplanes=16):
    midplanes = outplanes // 2
    k1, k2, k3 = jax.random.split(jax.random.PRNGKey(seed), 3)
    b1 = 1.0 / math.sqrt(inplanes * 3 * 1)
    b3 = 1.0 / math.sqrt(midplanes * 1 * 1)
    return {
        "conv1_w": jax.random.uniform(k1, (midplanes, inplanes, 3, 1),
                                      jnp.float32, -b1, b1),
        "bn1_w": jnp.ones((midplanes,), jnp.float32),
        "bn1_b": jnp.zeros((midplanes,), jnp.float32),
        "conv3_w": jax.random.uniform(k2, (outplanes, midplanes, 1, 1),
                                      jnp.float32, -b3, b3),
        "conv3_b": jax.random.uniform(k3, (outplanes,), jnp.float32, -b3, b3),
    }


# Pure-JAX reference (same math, precision=HIGHEST so the comparison is tight).
def pool_x_reference(p, x, eps=1e-5):
    N, C, H, W = x.shape
    x1 = jnp.mean(x, axis=3)                                     # (N, C, H)
    x1p = jnp.pad(x1, ((0, 0), (0, 0), (1, 1)))
    stk = jnp.stack([x1p[:, :, d:d + H] for d in range(3)], axis=-1)   # (N,C,H,3)
    y = jnp.einsum('nchk,mck->nmh', stk, p["conv1_w"][:, :, :, 0],
                   precision=_HIGHEST)
    mean = jnp.mean(y, axis=(0, 2), keepdims=True)
    var = jnp.mean((y - mean) ** 2, axis=(0, 2), keepdims=True)
    y = (y - mean) / jnp.sqrt(var + eps) * p["bn1_w"][None, :, None] \
        + p["bn1_b"][None, :, None]
    y = jnp.maximum(y, 0.0)
    z = jnp.einsum('nmh,om->noh', y, p["conv3_w"][:, :, 0, 0],
                   precision=_HIGHEST) + p["conv3_b"][None, :, None]
    weight = jax.nn.sigmoid(z)[:, :, :, None]                    # (N, Cout, H, 1)
    return weight * x + x


if __name__ == "__main__":
    inplanes = outplanes = 16          # module defaults
    params = init_params(42, inplanes, outplanes)
    x = jax.random.uniform(jax.random.PRNGKey(0), (2, inplanes, 16, 16), jnp.float32)

    out = pool_x_forward(params, x)
    jax.block_until_ready(out)
    assert out.shape == x.shape

    ref = pool_x_reference(params, x)
    err = float(jnp.max(jnp.abs(out - ref)))
    # precision=HIGHEST + two-pass variance keep the error at ~1e-6; 5e-3 bound
    # leaves margin for library-level precision fallbacks while still being 40x
    # tighter than the previous 2e-1 tolerance.
    assert math.isfinite(err) and err < 5e-3, f"max abs error {err}"

    print("KERNEL_OK")
</pallas_src>

<mosaic_0001>
module attributes {stable_mosaic.version = 11 : i64} {
  func.func @_wmean_kernel(%arg0: i32, %arg1: memref<32x256xf32, #tpu.memory_space<vmem>>, %arg2: memref<256x16xf32, #tpu.memory_space<vmem>>, %arg3: memref<32x16xf32, #tpu.memory_space<vmem>>) attributes {dimension_semantics = [#tpu.dimension_semantics<parallel>], iteration_bounds = array<i64: 1>, scalar_prefetch = 0 : i64, scratch_operands = 0 : i64, tpu.core_type = #tpu.core_type<tc>, window_params = [{transform_indices = @transform_0, window_bounds = array<i64: 32, 256>}, {pipeline_mode = #tpu.pipeline_mode<synchronous>, transform_indices = @transform_1, window_bounds = array<i64: 256, 16>}, {transform_indices = @transform_2, window_bounds = array<i64: 32, 16>}]} {
    %c0 = arith.constant 0 : index
    %c0_0 = arith.constant 0 : index
    %0 = vector.load %arg1[%c0, %c0_0] : memref<32x256xf32, #tpu.memory_space<vmem>>, vector<32x256xf32>
    %c0_1 = arith.constant 0 : index
    %c0_2 = arith.constant 0 : index
    %1 = vector.load %arg2[%c0_1, %c0_2] : memref<256x16xf32, #tpu.memory_space<vmem>>, vector<256x16xf32>
    %cst = arith.constant dense<0.000000e+00> : vector<32x16xf32>
    %2 = tpu.matmul %0, %1, %cst {dimension_numbers = #tpu.dot_dimension_numbers<[1], [0], [0], [1], [0, 0, 1, 1], [], []>, precision = #tpu.contract_precision<fp32>} : vector<32x256xf32>, vector<256x16xf32>, vector<32x16xf32> -> vector<32x16xf32>
    %c0_3 = arith.constant 0 : index
    %c0_4 = arith.constant 0 : index
    %3 = vector.load %arg3[%c0_3, %c0_4] : memref<32x16xf32, #tpu.memory_space<vmem>>, vector<32x16xf32>
    tpu.vector_store %arg3[%c0_3, %c0_4], %2 {strides = array<i32>} : memref<32x16xf32, #tpu.memory_space<vmem>>, vector<32x16xf32>,
    return
  }
  func.func @transform_0(%arg0: i32) -> (i32, i32) {
    %c0_i32 = arith.constant 0 : i32
    %c0_i32_0 = arith.constant 0 : i32
    return %arg0, %c0_i32 : i32, i32
  }
  func.func @transform_1(%arg0: i32) -> (i32, i32) {
    %c0_i32 = arith.constant 0 : i32
    %c0_i32_0 = arith.constant 0 : i32
    %c0_i32_1 = arith.constant 0 : i32
    return %c0_i32, %c0_i32_0 : i32, i32
  }
  func.func @transform_2(%arg0: i32) -> (i32, i32) {
    %c0_i32 = arith.constant 0 : i32
    %c0_i32_0 = arith.constant 0 : i32
    return %arg0, %c0_i32 : i32, i32
  }
}

</mosaic_0001>

<llo_original>
// kernel: tpu_custom_call.1
$region0: #{tpu_custom_call.1}
  #allocation0 [shape = 'u32[]', space=smem, size = 0x4, offset = 0x4, fixed_abs, tag = 'smem constant byte address 0x4 - core index']
  #allocation1 [shape = 'u32[144,128]{1,0:T(1,128)}', space=vmem, size = 0x12000, scoped, tag = 'internal scratch']
  %s0 = inlined_call_operand.vmem [shape: f32[32,256], index: 0, kind: input, shape index: {}]
  %s1 = inlined_call_operand.vmem [shape: f32[256,16], index: 1, kind: input, shape index: {}]
  %s2 = inlined_call_operand.vmem [shape: f32[32,16], index: 2, kind: output, shape index: {}]
  %s3 = sld [smem:[#allocation0]]
  $region18: #{tpu_custom_call.1} parent=0
    _
  %s5 = ssub.s32 1, %s3
  %s6 = scalar_select 0, %s5, %s3
  // Predicated region
  $region2: #{tpu_custom_call.1} parent=0 // pred_check
    _
  $region3: #{tpu_custom_call.1} parent=0 // pred_check_branch
    %8 = sbr.rel (0) target = $region5
  $region4: #{tpu_custom_call.1} parent=0 // pred_region
    _
  $region5: #{tpu_custom_call.1} parent=0 // pred_fallthru
    _
  // Predicated region
  $region6: #{tpu_custom_call.1} parent=0 // pred_check
    _
  $region7: #{tpu_custom_call.1} parent=0 // pred_check_branch
    %10 = sbr.rel (0) target = $region9
  $region8: #{tpu_custom_call.1} parent=0 // pred_region
    _
  $region9: #{tpu_custom_call.1} parent=0 // pred_fallthru
    _
  %v11 = vld [vmem:[%s0] sm:$0xff]
  %v12 = vld [vmem:[%s0 + $0x8] sm:$0xff]
  %v13 = vld [vmem:[%s0 + $0x10] sm:$0xff]
  %v14 = vld [vmem:[%s0 + $0x18] sm:$0xff]
  %v15 = vld [vmem:[%s0 + $0x20] sm:$0xff]
  %v16 = vld [vmem:[%s0 + $0x28] sm:$0xff]
  %v17 = vld [vmem:[%s0 + $0x30] sm:$0xff]
  %v18 = vld [vmem:[%s0 + $0x38] sm:$0xff]
  %v19 = vld [vmem:[%s1] sm:$0xff]
  %v20 = vld [vmem:[%s1 + $0x8] sm:$0xff]
  %v21 = vld [vmem:[%s1 + $0x10] sm:$0xff]
  %v22 = vld [vmem:[%s1 + $0x18] sm:$0xff]
  %v23 = vld [vmem:[%s1 + $0x20] sm:$0xff]
  %v24 = vld [vmem:[%s1 + $0x28] sm:$0xff]
  %v25 = vld [vmem:[%s1 + $0x30] sm:$0xff]
  %v26 = vld [vmem:[%s1 + $0x38] sm:$0xff]
  %v27 = vld [vmem:[%s1 + $0x40] sm:$0xff]
  %v28 = vld [vmem:[%s1 + $0x48] sm:$0xff]
  %v29 = vld [vmem:[%s1 + $0x50] sm:$0xff]
  %v30 = vld [vmem:[%s1 + $0x58] sm:$0xff]
  %v31 = vld [vmem:[%s1 + $0x60] sm:$0xff]
  %v32 = vld [vmem:[%s1 + $0x68] sm:$0xff]
  %v33 = vld [vmem:[%s1 + $0x70] sm:$0xff]
  %v34 = vld [vmem:[%s1 + $0x78] sm:$0xff]
  %v35 = vld [vmem:[%s1 + $0x80] sm:$0xff]
  %v36 = vld [vmem:[%s1 + $0x88] sm:$0xff]
  %v37 = vld [vmem:[%s1 + $0x90] sm:$0xff]
  %v38 = vld [vmem:[%s1 + $0x98] sm:$0xff]
  %v39 = vld [vmem:[%s1 + $0xa0] sm:$0xff]
  %v40 = vld [vmem:[%s1 + $0xa8] sm:$0xff]
  %v41 = vld [vmem:[%s1 + $0xb0] sm:$0xff]
  %v42 = vld [vmem:[%s1 + $0xb8] sm:$0xff]
  %v43 = vld [vmem:[%s1 + $0xc0] sm:$0xff]
  %v44 = vld [vmem:[%s1 + $0xc8] sm:$0xff]
  %v45 = vld [vmem:[%s1 + $0xd0] sm:$0xff]
  %v46 = vld [vmem:[%s1 + $0xd8] sm:$0xff]
  %v47 = vld [vmem:[%s1 + $0xe0] sm:$0xff]
  %v48 = vld [vmem:[%s1 + $0xe8] sm:$0xff]
  %v49 = vld [vmem:[%s1 + $0xf0] sm:$0xff]
  %v50 = vld [vmem:[%s1 + $0xf8] sm:$0xff]
  %51 = vmatprep.subr.mxu0 0.0
  %v52 = vand.u32 %v19, 4294901760
  %53 = vmatpush1.msra.mxu0 %v52
  %54 = vmatprep.subr.mxu0 0.0
  %v55 = vand.u32 %v20, 4294901760
  %56 = vmatpush1.msra.mxu0 %v55
  %57 = vmatprep.subr.mxu0 0.0
  %v58 = vand.u32 %v21, 4294901760
  %59 = vmatpush1.msra.mxu0 %v58
  %60 = vmatprep.subr.mxu0 0.0
  %v61 = vand.u32 %v22, 4294901760
  %62 = vmatpush1.msra.mxu0 %v61
  %63 = vmatprep.subr.mxu0 0.0
  %v64 = vand.u32 %v23, 4294901760
  %65 = vmatpush1.msra.mxu0 %v64
  %66 = vmatprep.subr.mxu0 0.0
  %v67 = vand.u32 %v24, 4294901760
  %68 = vmatpush1.msra.mxu0 %v67
  %69 = vmatprep.subr.mxu0 0.0
  %v70 = vand.u32 %v25, 4294901760
  %71 = vmatpush1.msra.mxu0 %v70
  %72 = vmatprep.subr.mxu0 0.0
  %v73 = vand.u32 %v26, 4294901760
  %74 = vmatpush1.msra.mxu0 %v73
  %75 = vmatprep.subr.mxu0 0.0
  %v76 = vand.u32 %v27, 4294901760
  %77 = vmatpush1.msra.mxu0 %v76
  %78 = vmatprep.subr.mxu0 0.0
  %v79 = vand.u32 %v28, 4294901760
  %80 = vmatpush1.msra.mxu0 %v79
  %81 = vmatprep.subr.mxu0 0.0
  %v82 = vand.u32 %v29, 4294901760
  %83 = vmatpush1.msra.mxu0 %v82
  %84 = vmatprep.subr.mxu0 0.0
  %v85 = vand.u32 %v30, 4294901760
  %86 = vmatpush1.msra.mxu0 %v85
  %87 = vmatprep.subr.mxu0 0.0
  %v88 = vand.u32 %v31, 4294901760
  %89 = vmatpush1.msra.mxu0 %v88
  %90 = vmatprep.subr.mxu0 0.0
  %v91 = vand.u32 %v32, 4294901760
  %92 = vmatpush1.msra.mxu0 %v91
  %93 = vmatprep.subr.mxu0 0.0
  %v94 = vand.u32 %v33, 4294901760
  %95 = vmatpush1.msra.mxu0 %v94
  %96 = vmatprep.subr.mxu0 0.0
  %v97 = vand.u32 %v34, 4294901760
  %98 = vmatpush1.msra.mxu0 %v97
  %99 = vmatprep.subr.mxu0 0.0
  %v100 = vand.u32 %v35, 4294901760
  %101 = vmatpush1.msra.mxu0 %v100
  %102 = vmatprep.subr.mxu0 0.0
  %v103 = vand.u32 %v36, 4294901760
  %104 = vmatpush1.msra.mxu0 %v103
  %105 = vmatprep.subr.mxu0 0.0
  %v106 = vand.u32 %v37, 4294901760
  %107 = vmatpush1.msra.mxu0 %v106
  %108 = vmatprep.subr.mxu0 0.0
  %v109 = vand.u32 %v38, 4294901760
  %110 = vmatpush1.msra.mxu0 %v109
  %111 = vmatprep.subr.mxu0 0.0
  %v112 = vand.u32 %v39, 4294901760
  %113 = vmatpush1.msra.mxu0 %v112
  %114 = vmatprep.subr.mxu0 0.0
  %v115 = vand.u32 %v40, 4294901760
  %116 = vmatpush1.msra.mxu0 %v115
  %117 = vmatprep.subr.mxu0 0.0
  %v118 = vand.u32 %v41, 4294901760
  %119 = vmatpush1.msra.mxu0 %v118
  %120 = vmatprep.subr.mxu0 0.0
  %v121 = vand.u32 %v42, 4294901760
  %122 = vmatpush1.msra.mxu0 %v121
  %123 = vmatprep.subr.mxu0 0.0
  %v124 = vand.u32 %v43, 4294901760
  %125 = vmatpush1.msra.mxu0 %v124
  %126 = vmatprep.subr.mxu0 0.0
  %v127 = vand.u32 %v44, 4294901760
  %128 = vmatpush1.msra.mxu0 %v127
  %129 = vmatprep.subr.mxu0 0.0
  %v130 = vand.u32 %v45, 4294901760
  %131 = vmatpush1.msra.mxu0 %v130
  %132 = vmatprep.subr.mxu0 0.0
  %v133 = vand.u32 %v46, 4294901760
  %134 = vmatpush1.msra.mxu0 %v133
  %135 = vmatprep.subr.mxu0 0.0
  %v136 = vand.u32 %v47, 4294901760
  %137 = vmatpush1.msra.mxu0 %v136
  %138 = vmatprep.subr.mxu0 0.0
  %v139 = vand.u32 %v48, 4294901760
  %140 = vmatpush1.msra.mxu0 %v139
  %141 = vmatprep.subr.mxu0 0.0
  %v142 = vand.u32 %v49, 4294901760
  %143 = vmatpush1.msra.mxu0 %v142
  %144 = vmatprep.subr.mxu0 0.0
  %v145 = vand.u32 %v50, 4294901760
  %146 = vmatpush1.msra.mxu0 %v145
  %v147 = vand.u32 %v12, 4294901760
  %v148 = vsub.f32 %v12, %v147
  %v149 = vand.u32 %v148, 4294901760
  %v150 = vsub.f32 %v148, %v149
  %v151 = vand.u32 %v150, 4294901760
  %152 = vmatprep.mubr.f32.mxu0 %v151
  %v153 = vand.u32 %v11, 4294901760
  %v154 = vsub.f32 %v11, %v153
  %v155 = vand.u32 %v154, 4294901760
  %v156 = vsub.f32 %v154, %v155
  %v157 = vand.u32 %v156, 4294901760
  %158 = vmatmul.mubr.f32.gmra.mrb[0].mxu0 %v157
  %v159 = vpop.f32.mrb[0].mxu0
  %v160 = vadd.f32 0.0, %v159
  %v161 = vpop.f32.mrb[0].mxu0
  %v162 = vand.u32 %v14, 4294901760
  %v163 = vsub.f32 %v14, %v162
  %v164 = vand.u32 %v163, 4294901760
  %v165 = vsub.f32 %v163, %v164
  %v166 = vand.u32 %v165, 4294901760
  %167 = vmatprep.mubr.f32.mxu0 %v166
  %v168 = vand.u32 %v13, 4294901760
  %v169 = vsub.f32 %v13, %v168
  %v170 = vand.u32 %v169, 4294901760
  %v171 = vsub.f32 %v169, %v170
  %v172 = vand.u32 %v171, 4294901760
  %173 = vmatmul.mubr.f32.gmra.mrb[0].mxu0 %v172
  %v174 = vpop.f32.mrb[0].mxu0
  %v175 = vadd.f32 0.0, %v174
  %v176 = vpop.f32.mrb[0].mxu0
  %v177 = vand.u32 %v16, 4294901760
  %v178 = vsub.f32 %v16, %v177
  %v179 = vand.u32 %v178, 4294901760
  %v180 = vsub.f32 %v178, %v179
  %v181 = vand.u32 %v180, 4294901760
  %182 = vmatprep.mubr.f32.mxu0 %v181
  %v183 = vand.u32 %v15, 4294901760
  %v184 = vsub.f32 %v15, %v183
  %v185 = vand.u32 %v184, 4294901760
  %v186 = vsub.f32 %v184, %v185
  %v187 = vand.u32 %v186, 4294901760
  %188 = vmatmul.mubr.f32.gmra.mrb[0].mxu0 %v187
  %v189 = vpop.f32.mrb[0].mxu0
  %v190 = vadd.f32 0.0, %v189
  %v191 = vpop.f32.mrb[0].mxu0
  %v192 = vand.u32 %v18, 4294901760
  %v193 = vsub.f32 %v18, %v192
  %v194 = vand.u32 %v193, 4294901760
  %v195 = vsub.f32 %v193, %v194
  %v196 = vand.u32 %v195, 4294901760
  %197 = vmatprep.mubr.f32.mxu0 %v196
  %v198 = vand.u32 %v17, 4294901760
  %v199 = vsub.f32 %v17, %v198
  %v200 = vand.u32 %v199, 4294901760
  %v201 = vsub.f32 %v199, %v200
  %v202 = vand.u32 %v201, 4294901760
  %203 = vmatmul.mubr.f32.gmra.mrb[0].mxu0 %v202
  %v204 = vpop.f32.mrb[0].mxu0
  %v205 = vadd.f32 0.0, %v204
  %v206 = vpop.f32.mrb[0].mxu0
  %207 = vdwg.mxu0
  %208 = vmatprep.subr.mxu0 0.0
  %v209 = vand.u32 %v19, 4294901760
  %v210 = vsub.f32 %v19, %v209
  %v211 = vand.u32 %v210, 4294901760
  %v212 = vsub.f32 %v210, %v211
  %v213 = vand.u32 %v212, 4294901760
  %214 = vmatpush1.msra.mxu0 %v213
  %215 = vmatprep.subr.mxu0 0.0
  %v216 = vand.u32 %v20, 4294901760
  %v217 = vsub.f32 %v20, %v216
  %v218 = vand.u32 %v217, 4294901760
  %v219 = vsub.f32 %v217, %v218
  %v220 = vand.u32 %v219, 4294901760
  %221 = vmatpush1.msra.mxu0 %v220
  %222 = vmatprep.subr.mxu0 0.0
  %v223 = vand.u32 %v21, 4294901760
  %v224 = vsub.f32 %v21, %v223
  %v225 = vand.u32 %v224, 4294901760
  %v226 = vsub.f32 %v224, %v225
  %v227 = vand.u32 %v226, 4294901760
  %228 = vmatpush1.msra.mxu0 %v227
  %229 = vmatprep.subr.mxu0 0.0
  %v230 = vand.u32 %v22, 4294901760
  %v231 = vsub.f32 %v22, %v230
  %v232 = vand.u32 %v231, 4294901760
  %v233 = vsub.f32 %v231, %v232
  %v234 = vand.u32 %v233, 4294901760
  %235 = vmatpush1.msra.mxu0 %v234
  %236 = vmatprep.subr.mxu0 0.0
  %v237 = vand.u32 %v23, 4294901760
  %v238 = vsub.f32 %v23, %v237
  %v239 = vand.u32 %v238, 4294901760
  %v240 = vsub.f32 %v238, %v239
  %v241 = vand.u32 %v240, 4294901760
  %242 = vmatpush1.msra.mxu0 %v241
  %243 = vmatprep.subr.mxu0 0.0
  %v244 = vand.u32 %v24, 4294901760
  %v245 = vsub.f32 %v24, %v244
  %v246 = vand.u32 %v245, 4294901760
  %v247 = vsub.f32 %v245, %v246
  %v248 = vand.u32 %v247, 4294901760
  %249 = vmatpush1.msra.mxu0 %v248
  %250 = vmatprep.subr.mxu0 0.0
  %v251 = vand.u32 %v25, 4294901760
  %v252 = vsub.f32 %v25, %v251
  %v253 = vand.u32 %v252, 4294901760
  %v254 = vsub.f32 %v252, %v253
  %v255 = vand.u32 %v254, 4294901760
  %256 = vmatpush1.msra.mxu0 %v255
  %257 = vmatprep.subr.mxu0 0.0
  %v258 = vand.u32 %v26, 4294901760
  %v259 = vsub.f32 %v26, %v258
  %v260 = vand.u32 %v259, 4294901760
  %v261 = vsub.f32 %v259, %v260
  %v262 = vand.u32 %v261, 4294901760
  %263 = vmatpush1.msra.mxu0 %v262
  %264 = vmatprep.subr.mxu0 0.0
  %v265 = vand.u32 %v27, 4294901760
  %v266 = vsub.f32 %v27, %v265
  %v267 = vand.u32 %v266, 4294901760
  %v268 = vsub.f32 %v266, %v267
  %v269 = vand.u32 %v268, 4294901760
  %270 = vmatpush1.msra.mxu0 %v269
  %271 = vmatprep.subr.mxu0 0.0
  %v272 = vand.u32 %v28, 4294901760
  %v273 = vsub.f32 %v28, %v272
  %v274 = vand.u32 %v273, 4294901760
  %v275 = vsub.f32 %v273, %v274
  %v276 = vand.u32 %v275, 4294901760
  %277 = vmatpush1.msra.mxu0 %v276
  %278 = vmatprep.subr.mxu0 0.0
  %v279 = vand.u32 %v29, 4294901760
  %v280 = vsub.f32 %v29, %v279
  %v281 = vand.u32 %v280, 4294901760
  %v282 = vsub.f32 %v280, %v281
  %v283 = vand.u32 %v282, 4294901760
  %284 = vmatpush1.msra.mxu0 %v283
  %285 = vmatprep.subr.mxu0 0.0
  %v286 = vand.u32 %v30, 4294901760
  %v287 = vsub.f32 %v30, %v286
  %v288 = vand.u32 %v287, 4294901760
  %v289 = vsub.f32 %v287, %v288
  %v290 = vand.u32 %v289, 4294901760
  %291 = vmatpush1.msra.mxu0 %v290
  %292 = vmatprep.subr.mxu0 0.0
  %v293 = vand.u32 %v31, 4294901760
  %v294 = vsub.f32 %v31, %v293
  %v295 = vand.u32 %v294, 4294901760
  %v296 = vsub.f32 %v294, %v295
  %v297 = vand.u32 %v296, 4294901760
  %298 = vmatpush1.msra.mxu0 %v297
  %299 = vmatprep.subr.mxu0 0.0
  %v300 = vand.u32 %v32, 4294901760
  %v301 = vsub.f32 %v32, %v300
  %v302 = vand.u32 %v301, 4294901760
  %v303 = vsub.f32 %v301, %v302
  %v304 = vand.u32 %v303, 4294901760
  %305 = vmatpush1.msra.mxu0 %v304
  %306 = vmatprep.subr.mxu0 0.0
  %v307 = vand.u32 %v33, 4294901760
  %v308 = vsub.f32 %v33, %v307
  %v309 = vand.u32 %v308, 4294901760
  %v310 = vsub.f32 %v308, %v309
  %v311 = vand.u32 %v310, 4294901760
  %312 = vmatpush1.msra.mxu0 %v311
  %313 = vmatprep.subr.mxu0 0.0
  %v314 = vand.u32 %v34, 4294901760
  %v315 = vsub.f32 %v34, %v314
  %v316 = vand.u32 %v315, 4294901760
  %v317 = vsub.f32 %v315, %v316
  %v318 = vand.u32 %v317, 4294901760
  %319 = vmatpush1.msra.mxu0 %v318
  %320 = vmatprep.subr.mxu0 0.0
  %v321 = vand.u32 %v35, 4294901760
  %v322 = vsub.f32 %v35, %v321
  %v323 = vand.u32 %v322, 4294901760
  %v324 = vsub.f32 %v322, %v323
  %v325 = vand.u32 %v324, 4294901760
  %326 = vmatpush1.msra.mxu0 %v325
  %327 = vmatprep.subr.mxu0 0.0
  %v328 = vand.u32 %v36, 4294901760
  %v329 = vsub.f32 %v36, %v328
  %v330 = vand.u32 %v329, 4294901760
  %v331 = vsub.f32 %v329, %v330
  %v332 = vand.u32 %v331, 4294901760
  %333 = vmatpush1.msra.mxu0 %v332
  %334 = vmatprep.subr.mxu0 0.0
  %v335 = vand.u32 %v37, 4294901760
  %v336 = vsub.f32 %v37, %v335
  %v337 = vand.u32 %v336, 4294901760
  %v338 = vsub.f32 %v336, %v337
  %v339 = vand.u32 %v338, 4294901760
  %340 = vmatpush1.msra.mxu0 %v339
  %341 = vmatprep.subr.mxu0 0.0
  %v342 = vand.u32 %v38, 4294901760
  %v343 = vsub.f32 %v38, %v342
  %v344 = vand.u32 %v343, 4294901760
  %v345 = vsub.f32 %v343, %v344
  %v346 = vand.u32 %v345, 4294901760
  %347 = vmatpush1.msra.mxu0 %v346
  %348 = vmatprep.subr.mxu0 0.0
  %v349 = vand.u32 %v39, 4294901760
  %v350 = vsub.f32 %v39, %v349
  %v351 = vand.u32 %v350, 4294901760
  %v352 = vsub.f32 %v350, %v351
  %v353 = vand.u32 %v352, 4294901760
  %354 = vmatpush1.msra.mxu0 %v353
  %355 = vmatprep.subr.mxu0 0.0
  %v356 = vand.u32 %v40, 4294901760
  %v357 = vsub.f32 %v40, %v356
  %v358 = vand.u32 %v357, 4294901760
  %v359 = vsub.f32 %v357, %v358
  %v360 = vand.u32 %v359, 4294901760
  %361 = vmatpush1.msra.mxu0 %v360
  %362 = vmatprep.subr.mxu0 0.0
  %v363 = vand.u32 %v41, 4294901760
  %v364 = vsub.f32 %v41, %v363
  %v365 = vand.u32 %v364, 4294901760
  %v366 = vsub.f32 %v364, %v365
  %v367 = vand.u32 %v366, 4294901760
  %368 = vmatpush1.msra.mxu0 %v367
  %369 = vmatprep.subr.mxu0 0.0
  %v370 = vand.u32 %v42, 4294901760
  %v371 = vsub.f32 %v42, %v370
  %v372 = vand.u32 %v371, 4294901760
  %v373 = vsub.f32 %v371, %v372
  %v374 = vand.u32 %v373, 4294901760
  %375 = vmatpush1.msra.mxu0 %v374
  %376 = vmatprep.subr.mxu0 0.0
  %v377 = vand.u32 %v43, 4294901760
  %v378 = vsub.f32 %v43, %v377
  %v379 = vand.u32 %v378, 4294901760
  %v380 = vsub.f32 %v378, %v379
  %v381 = vand.u32 %v380, 4294901760
  %382 = vmatpush1.msra.mxu0 %v381
  %383 = vmatprep.subr.mxu0 0.0
  %v384 = vand.u32 %v44, 4294901760
  %v385 = vsub.f32 %v44, %v384
  %v386 = vand.u32 %v385, 4294901760
  %v387 = vsub.f32 %v385, %v386
  %v388 = vand.u32 %v387, 4294901760
  %389 = vmatpush1.msra.mxu0 %v388
  %390 = vmatprep.subr.mxu0 0.0
  %v391 = vand.u32 %v45, 4294901760
  %v392 = vsub.f32 %v45, %v391
  %v393 = vand.u32 %v392, 4294901760
  %v394 = vsub.f32 %v392, %v393
  %v395 = vand.u32 %v394, 4294901760
  %396 = vmatpush1.msra.mxu0 %v395
  %397 = vmatprep.subr.mxu0 0.0
  %v398 = vand.u32 %v46, 4294901760
  %v399 = vsub.f32 %v46, %v398
  %v400 = vand.u32 %v399, 4294901760
  %v401 = vsub.f32 %v399, %v400
  %v402 = vand.u32 %v401, 4294901760
  %403 = vmatpush1.msra.mxu0 %v402
  %404 = vmatprep.subr.mxu0 0.0
  %v405 = vand.u32 %v47, 4294901760
  %v406 = vsub.f32 %v47, %v405
  %v407 = vand.u32 %v406, 4294901760
  %v408 = vsub.f32 %v406, %v407
  %v409 = vand.u32 %v408, 4294901760
  %410 = vmatpush1.msra.mxu0 %v409
  %411 = vmatprep.subr.mxu0 0.0
  %v412 = vand.u32 %v48, 4294901760
  %v413 = vsub.f32 %v48, %v412
  %v414 = vand.u32 %v413, 4294901760
  %v415 = vsub.f32 %v413, %v414
  %v416 = vand.u32 %v415, 4294901760
  %417 = vmatpush1.msra.mxu0 %v416
  %418 = vmatprep.subr.mxu0 0.0
  %v419 = vand.u32 %v49, 4294901760
  %v420 = vsub.f32 %v49, %v419
  %v421 = vand.u32 %v420, 4294901760
  %v422 = vsub.f32 %v420, %v421
  %v423 = vand.u32 %v422, 4294901760
  %424 = vmatpush1.msra.mxu0 %v423
  %425 = vmatprep.subr.mxu0 0.0
  %v426 = vand.u32 %v50, 4294901760
  %v427 = vsub.f32 %v50, %v426
  %v428 = vand.u32 %v427, 4294901760
  %v429 = vsub.f32 %v427, %v428
  %v430 = vand.u32 %v429, 4294901760
  %431 = vmatpush1.msra.mxu0 %v430
  %v432 = vand.u32 %v12, 4294901760
  %433 = vmatprep.mubr.f32.mxu0 %v432
  %v434 = vand.u32 %v11, 4294901760
  %435 = vmatmul.mubr.f32.gmra.mrb[0].mxu0 %v434
  %v436 = vpop.f32.mrb[0].mxu0
  %v437 = vadd.f32 %v160, %v436
  %v438 = vpop.f32.mrb[0].mxu0
  %v439 = vand.u32 %v14, 4294901760
  %440 = vmatprep.mubr.f32.mxu0 %v439
  %v441 = vand.u32 %v13, 4294901760
  %442 = vmatmul.mubr.f32.gmra.mrb[0].mxu0 %v441
  %v443 = vpop.f32.mrb[0].mxu0
  %v444 = vadd.f32 %v175, %v443
  %v445 = vpop.f32.mrb[0].mxu0
  %v446 = vand.u32 %v16, 4294901760
  %447 = vmatprep.mubr.f32.mxu0 %v446
  %v448 = vand.u32 %v15, 4294901760
  %449 = vmatmul.mubr.f32.gmra.mrb[0].mxu0 %v448
  %v450 = vpop.f32.mrb[0].mxu0
  %v451 = vadd.f32 %v190, %v450
  %v452 = vpop.f32.mrb[0].mxu0
  %v453 = vand.u32 %v18, 4294901760
  %454 = vmatprep.mubr.f32.mxu0 %v453
  %v455 = vand.u32 %v17, 4294901760
  %456 = vmatmul.mubr.f32.gmra.mrb[0].mxu0 %v455
  %v457 = vpop.f32.mrb[0].mxu0
  %v458 = vadd.f32 %v205, %v457
  %v459 = vpop.f32.mrb[0].mxu0
  %460 = vdwg.mxu0
  %461 = vmatprep.subr.mxu0 0.0
  %v462 = vand.u32 %v19, 4294901760
  %v463 = vsub.f32 %v19, %v462
  %464 = vmatpush1.msra.mxu0 %v463
  %465 = vmatprep.subr.mxu0 0.0
  %v466 = vand.u32 %v20, 4294901760
  %v467 = vsub.f32 %v20, %v466
  %468 = vmatpush1.msra.mxu0 %v467
  %469 = vmatprep.subr.mxu0 0.0
  %v470 = vand.u32 %v21, 4294901760
  %v471 = vsub.f32 %v21, %v470
  %472 = vmatpush1.msra.mxu0 %v471
  %473 = vmatprep.subr.mxu0 0.0
  %v474 = vand.u32 %v22, 4294901760
  %v475 = vsub.f32 %v22, %v474
  %476 = vmatpush1.msra.mxu0 %v475
  %477 = vmatprep.subr.mxu0 0.0
  %v478 = vand.u32 %v23, 4294901760
  %v479 = vsub.f32 %v23, %v478
  %480 = vmatpush1.msra.mxu0 %v479
  %481 = vmatprep.subr.mxu0 0.0
  %v482 = vand.u32 %v24, 4294901760
  %v483 = vsub.f32 %v24, %v482
  %484 = vmatpush1.msra.mxu0 %v483
  %485 = vmatprep.subr.mxu0 0.0
  %v486 = vand.u32 %v25, 4294901760
  %v487 = vsub.f32 %v25, %v486
  %488 = vmatpush1.msra.mxu0 %v487
  %489 = vmatprep.subr.mxu0 0.0
  %v490 = vand.u32 %v26, 4294901760
  %v491 = vsub.f32 %v26, %v490
  %492 = vmatpush1.msra.mxu0 %v491
  %493 = vmatprep.subr.mxu0 0.0
  %v494 = vand.u32 %v27, 4294901760
  %v495 = vsub.f32 %v27, %v494
  %496 = vmatpush1.msra.mxu0 %v495
  %497 = vmatprep.subr.mxu0 0.0
  %v498 = vand.u32 %v28, 4294901760
  %v499 = vsub.f32 %v28, %v498
  %500 = vmatpush1.msra.mxu0 %v499
  %501 = vmatprep.subr.mxu0 0.0
  %v502 = vand.u32 %v29, 4294901760
  %v503 = vsub.f32 %v29, %v502
  %504 = vmatpush1.msra.mxu0 %v503
  %505 = vmatprep.subr.mxu0 0.0
  %v506 = vand.u32 %v30, 4294901760
  %v507 = vsub.f32 %v30, %v506
  %508 = vmatpush1.msra.mxu0 %v507
  %509 = vmatprep.subr.mxu0 0.0
  %v510 = vand.u32 %v31, 4294901760
  %v511 = vsub.f32 %v31, %v510
  %512 = vmatpush1.msra.mxu0 %v511
  %513 = vmatprep.subr.mxu0 0.0
  %v514 = vand.u32 %v32, 4294901760
  %v515 = vsub.f32 %v32, %v514
  %516 = vmatpush1.msra.mxu0 %v515
  %517 = vmatprep.subr.mxu0 0.0
  %v518 = vand.u32 %v33, 4294901760
  %v519 = vsub.f32 %v33, %v518
  %520 = vmatpush1.msra.mxu0 %v519
  %521 = vmatprep.subr.mxu0 0.0
  %v522 = vand.u32 %v34, 4294901760
  %v523 = vsub.f32 %v34, %v522
  %524 = vmatpush1.msra.mxu0 %v523
  %525 = vmatprep.subr.mxu0 0.0
  %v526 = vand.u32 %v35, 4294901760
  %v527 = vsub.f32 %v35, %v526
  %528 = vmatpush1.msra.mxu0 %v527
  %529 = vmatprep.subr.mxu0 0.0
  %v530 = vand.u32 %v36, 4294901760
  %v531 = vsub.f32 %v36, %v530
  %532 = vmatpush1.msra.mxu0 %v531
  %533 = vmatprep.subr.mxu0 0.0
  %v534 = vand.u32 %v37, 4294901760
  %v535 = vsub.f32 %v37, %v534
  %536 = vmatpush1.msra.mxu0 %v535
  %537 = vmatprep.subr.mxu0 0.0
  %v538 = vand.u32 %v38, 4294901760
  %v539 = vsub.f32 %v38, %v538
  %540 = vmatpush1.msra.mxu0 %v539
  %541 = vmatprep.subr.mxu0 0.0
  %v542 = vand.u32 %v39, 4294901760
  %v543 = vsub.f32 %v39, %v542
  %544 = vmatpush1.msra.mxu0 %v543
  %545 = vmatprep.subr.mxu0 0.0
  %v546 = vand.u32 %v40, 4294901760
  %v547 = vsub.f32 %v40, %v546
  %548 = vmatpush1.msra.mxu0 %v547
  %549 = vmatprep.subr.mxu0 0.0
  %v550 = vand.u32 %v41, 4294901760
  %v551 = vsub.f32 %v41, %v550
  %552 = vmatpush1.msra.mxu0 %v551
  %553 = vmatprep.subr.mxu0 0.0
  %v554 = vand.u32 %v42, 4294901760
  %v555 = vsub.f32 %v42, %v554
  %556 = vmatpush1.msra.mxu0 %v555
  %557 = vmatprep.subr.mxu0 0.0
  %v558 = vand.u32 %v43, 4294901760
  %v559 = vsub.f32 %v43, %v558
  %560 = vmatpush1.msra.mxu0 %v559
  %561 = vmatprep.subr.mxu0 0.0
  %v562 = vand.u32 %v44, 4294901760
  %v563 = vsub.f32 %v44, %v562
  %564 = vmatpush1.msra.mxu0 %v563
  %565 = vmatprep.subr.mxu0 0.0
  %v566 = vand.u32 %v45, 4294901760
  %v567 = vsub.f32 %v45, %v566
  %568 = vmatpush1.msra.mxu0 %v567
  %569 = vmatprep.subr.mxu0 0.0
  %v570 = vand.u32 %v46, 4294901760
  %v571 = vsub.f32 %v46, %v570
  %572 = vmatpush1.msra.mxu0 %v571
  %573 = vmatprep.subr.mxu0 0.0
  %v574 = vand.u32 %v47, 4294901760
  %v575 = vsub.f32 %v47, %v574
  %576 = vmatpush1.msra.mxu0 %v575
  %577 = vmatprep.subr.mxu0 0.0
  %v578 = vand.u32 %v48, 4294901760
  %v579 = vsub.f32 %v48, %v578
  %580 = vmatpush1.msra.mxu0 %v579
  %581 = vmatprep.subr.mxu0 0.0
  %v582 = vand.u32 %v49, 4294901760
  %v583 = vsub.f32 %v49, %v582
  %584 = vmatpush1.msra.mxu0 %v583
  %585 = vmatprep.subr.mxu0 0.0
  %v586 = vand.u32 %v50, 4294901760
  %v587 = vsub.f32 %v50, %v586
  %588 = vmatpush1.msra.mxu0 %v587
  %v589 = vand.u32 %v12, 4294901760
  %v590 = vsub.f32 %v12, %v589
  %591 = vmatprep.mubr.f32.mxu0 %v590
  %v592 = vand.u32 %v11, 4294901760
  %v593 = vsub.f32 %v11, %v592
  %594 = vmatmul.mubr.f32.gmra.mrb[0].mxu0 %v593
  %v595 = vpop.f32.mrb[0].mxu0
  %v596 = vadd.f32 %v437, %v595
  %v597 = vpop.f32.mrb[0].mxu0
  %v598 = vand.u32 %v14, 4294901760
  %v599 = vsub.f32 %v14, %v598
  %600 = vmatprep.mubr.f32.mxu0 %v599
  %v601 = vand.u32 %v13, 4294901760
  %v602 = vsub.f32 %v13, %v601
  %603 = vmatmul.mubr.f32.gmra.mrb[0].mxu0 %v602
  %v604 = vpop.f32.mrb[0].mxu0
  %v605 = vadd.f32 %v444, %v604
  %v606 = vpop.f32.mrb[0].mxu0
  %v607 = vand.u32 %v16, 4294901760
  %v608 = vsub.f32 %v16, %v607
  %609 = vmatprep.mubr.f32.mxu0 %v608
  %v610 = vand.u32 %v15, 4294901760
  %v611 = vsub.f32 %v15, %v610
  %612 = vmatmul.mubr.f32.gmra.mrb[0].mxu0 %v611
  %v613 = vpop.f32.mrb[0].mxu0
  %v614 = vadd.f32 %v451, %v613
  %v615 = vpop.f32.mrb[0].mxu0
  %v616 = vand.u32 %v18, 4294901760
  %v617 = vsub.f32 %v18, %v616
  %618 = vmatprep.mubr.f32.mxu0 %v617
  %v619 = vand.u32 %v17, 4294901760
  %v620 = vsub.f32 %v17, %v619
  %621 = vmatmul.mubr.f32.gmra.mrb[0].mxu0 %v620
  %v622 = vpop.f32.mrb[0].mxu0
  %v623 = vadd.f32 %v458, %v622
  %v624 = vpop.f32.mrb[0].mxu0
  %625 = vdwg.mxu0
  %626 = vmatprep.subr.mxu0 0.0
  %v627 = vand.u32 %v19, 4294901760
  %628 = vmatpush1.msra.mxu0 %v627
  %629 = vmatprep.subr.mxu0 0.0
  %v630 = vand.u32 %v20, 4294901760
  %631 = vmatpush1.msra.mxu0 %v630
  %632 = vmatprep.subr.mxu0 0.0
  %v633 = vand.u32 %v21, 4294901760
  %634 = vmatpush1.msra.mxu0 %v633
  %635 = vmatprep.subr.mxu0 0.0
  %v636 = vand.u32 %v22, 4294901760
  %637 = vmatpush1.msra.mxu0 %v636
  %638 = vmatprep.subr.mxu0 0.0
  %v639 = vand.u32 %v23, 4294901760
  %640 = vmatpush1.msra.mxu0 %v639
  %641 = vmatprep.subr.mxu0 0.0
  %v642 = vand.u32 %v24, 4294901760
  %643 = vmatpush1.msra.mxu0 %v642
  %644 = vmatprep.subr.mxu0 0.0
  %v645 = vand.u32 %v25, 4294901760
  %646 = vmatpush1.msra.mxu0 %v645
  %647 = vmatprep.subr.mxu0 0.0
  %v648 = vand.u32 %v26, 4294901760
  %649 = vmatpush1.msra.mxu0 %v648
  %650 = vmatprep.subr.mxu0 0.0
  %v651 = vand.u32 %v27, 4294901760
  %652 = vmatpush1.msra.mxu0 %v651
  %653 = vmatprep.subr.mxu0 0.0
  %v654 = vand.u32 %v28, 4294901760
  %655 = vmatpush1.msra.mxu0 %v654
  %656 = vmatprep.subr.mxu0 0.0
  %v657 = vand.u32 %v29, 4294901760
  %658 = vmatpush1.msra.mxu0 %v657
  %659 = vmatprep.subr.mxu0 0.0
  %v660 = vand.u32 %v30, 4294901760
  %661 = vmatpush1.msra.mxu0 %v660
  %662 = vmatprep.subr.mxu0 0.0
  %v663 = vand.u32 %v31, 4294901760
  %664 = vmatpush1.msra.mxu0 %v663
  %665 = vmatprep.subr.mxu0 0.0
  %v666 = vand.u32 %v32, 4294901760
  %667 = vmatpush1.msra.mxu0 %v666
  %668 = vmatprep.subr.mxu0 0.0
  %v669 = vand.u32 %v33, 4294901760
  %670 = vmatpush1.msra.mxu0 %v669
  %671 = vmatprep.subr.mxu0 0.0
  %v672 = vand.u32 %v34, 4294901760
  %673 = vmatpush1.msra.mxu0 %v672
  %674 = vmatprep.subr.mxu0 0.0
  %v675 = vand.u32 %v35, 4294901760
  %676 = vmatpush1.msra.mxu0 %v675
  %677 = vmatprep.subr.mxu0 0.0
  %v678 = vand.u32 %v36, 4294901760
  %679 = vmatpush1.msra.mxu0 %v678
  %680 = vmatprep.subr.mxu0 0.0
  %v681 = vand.u32 %v37, 4294901760
  %682 = vmatpush1.msra.mxu0 %v681
  %683 = vmatprep.subr.mxu0 0.0
  %v684 = vand.u32 %v38, 4294901760
  %685 = vmatpush1.msra.mxu0 %v684
  %686 = vmatprep.subr.mxu0 0.0
  %v687 = vand.u32 %v39, 4294901760
  %688 = vmatpush1.msra.mxu0 %v687
  %689 = vmatprep.subr.mxu0 0.0
  %v690 = vand.u32 %v40, 4294901760
  %691 = vmatpush1.msra.mxu0 %v690
  %692 = vmatprep.subr.mxu0 0.0
  %v693 = vand.u32 %v41, 4294901760
  %694 = vmatpush1.msra.mxu0 %v693
  %695 = vmatprep.subr.mxu0 0.0
  %v696 = vand.u32 %v42, 4294901760
  %697 = vmatpush1.msra.mxu0 %v696
  %698 = vmatprep.subr.mxu0 0.0
  %v699 = vand.u32 %v43, 4294901760
  %700 = vmatpush1.msra.mxu0 %v699
  %701 = vmatprep.subr.mxu0 0.0
  %v702 = vand.u32 %v44, 4294901760
  %703 = vmatpush1.msra.mxu0 %v702
  %704 = vmatprep.subr.mxu0 0.0
  %v705 = vand.u32 %v45, 4294901760
  %706 = vmatpush1.msra.mxu0 %v705
  %707 = vmatprep.subr.mxu0 0.0
  %v708 = vand.u32 %v46, 4294901760
  %709 = vmatpush1.msra.mxu0 %v708
  %710 = vmatprep.subr.mxu0 0.0
  %v711 = vand.u32 %v47, 4294901760
  %712 = vmatpush1.msra.mxu0 %v711
  %713 = vmatprep.subr.mxu0 0.0
  %v714 = vand.u32 %v48, 4294901760
  %715 = vmatpush1.msra.mxu0 %v714
  %716 = vmatprep.subr.mxu0 0.0
  %v717 = vand.u32 %v49, 4294901760
  %718 = vmatpush1.msra.mxu0 %v717
  %719 = vmatprep.subr.mxu0 0.0
  %v720 = vand.u32 %v50, 4294901760
  %721 = vmatpush1.msra.mxu0 %v720
  %v722 = vand.u32 %v12, 4294901760
  %v723 = vsub.f32 %v12, %v722
  %v724 = vand.u32 %v723, 4294901760
  %725 = vmatprep.mubr.f32.mxu0 %v724
  %v726 = vand.u32 %v11, 4294901760
  %v727 = vsub.f32 %v11, %v726
  %v728 = vand.u32 %v727, 4294901760
  %729 = vmatmul.mubr.f32.gmra.mrb[0].mxu0 %v728
  %v730 = vpop.f32.mrb[0].mxu0
  %v731 = vadd.f32 %v596, %v730
  %v732 = vpop.f32.mrb[0].mxu0
  %v733 = vand.u32 %v14, 4294901760
  %v734 = vsub.f32 %v14, %v733
  %v735 = vand.u32 %v734, 4294901760
  %736 = vmatprep.mubr.f32.mxu0 %v735
  %v737 = vand.u32 %v13, 4294901760
  %v738 = vsub.f32 %v13, %v737
  %v739 = vand.u32 %v738, 4294901760
  %740 = vmatmul.mubr.f32.gmra.mrb[0].mxu0 %v739
  %v741 = vpop.f32.mrb[0].mxu0
  %v742 = vadd.f32 %v605, %v741
  %v743 = vpop.f32.mrb[0].mxu0
  %v744 = vand.u32 %v16, 4294901760
  %v745 = vsub.f32 %v16, %v744
  %v746 = vand.u32 %v745, 4294901760
  %747 = vmatprep.mubr.f32.mxu0 %v746
  %v748 = vand.u32 %v15, 4294901760
  %v749 = vsub.f32 %v15, %v748
  %v750 = vand.u32 %v749, 4294901760
  %751 = vmatmul.mubr.f32.gmra.mrb[0].mxu0 %v750
  %v752 = vpop.f32.mrb[0].mxu0
  %v753 = vadd.f32 %v614, %v752
  %v754 = vpop.f32.mrb[0].mxu0
  %v755 = vand.u32 %v18, 4294901760
  %v756 = vsub.f32 %v18, %v755
  %v757 = vand.u32 %v756, 4294901760
  %758 = vmatprep.mubr.f32.mxu0 %v757
  %v759 = vand.u32 %v17, 4294901760
  %v760 = vsub.f32 %v17, %v759
  %v761 = vand.u32 %v760, 4294901760
  %762 = vmatmul.mubr.f32.gmra.mrb[0].mxu0 %v761
  %v763 = vpop.f32.mrb[0].mxu0
  %v764 = vadd.f32 %v623, %v763
  %v765 = vpop.f32.mrb[0].mxu0
  %766 = vdwg.mxu0
  %767 = vmatprep.subr.mxu0 0.0
  %v768 = vand.u32 %v19, 4294901760
  %v769 = vsub.f32 %v19, %v768
  %v770 = vand.u32 %v769, 4294901760
  %771 = vmatpush1.msra.mxu0 %v770
  %772 = vmatprep.subr.mxu0 0.0
  %v773 = vand.u32 %v20, 4294901760
  %v774 = vsub.f32 %v20, %v773
  %v775 = vand.u32 %v774, 4294901760
  %776 = vmatpush1.msra.mxu0 %v775
  %777 = vmatprep.subr.mxu0 0.0
  %v778 = vand.u32 %v21, 4294901760
  %v779 = vsub.f32 %v21, %v778
  %v780 = vand.u32 %v779, 4294901760
  %781 = vmatpush1.msra.mxu0 %v780
  %782 = vmatprep.subr.mxu0 0.0
  %v783 = vand.u32 %v22, 4294901760
  %v784 = vsub.f32 %v22, %v783
  %v785 = vand.u32 %v784, 4294901760
  %786 = vmatpush1.msra.mxu0 %v785
  %787 = vmatprep.subr.mxu0 0.0
  %v788 = vand.u32 %v23, 4294901760
  %v789 = vsub.f32 %v23, %v788
  %v790 = vand.u32 %v789, 4294901760
  %791 = vmatpush1.msra.mxu0 %v790
  %792 = vmatprep.subr.mxu0 0.0
  %v793 = vand.u32 %v24, 4294901760
  %v794 = vsub.f32 %v24, %v793
  %v795 = vand.u32 %v794, 4294901760
  %796 = vmatpush1.msra.mxu0 %v795
  %797 = vmatprep.subr.mxu0 0.0
  %v798 = vand.u32 %v25, 4294901760
  %v799 = vsub.f32 %v25, %v798
  %v800 = vand.u32 %v799, 4294901760
  %801 = vmatpush1.msra.mxu0 %v800
  %802 = vmatprep.subr.mxu0 0.0
  %v803 = vand.u32 %v26, 4294901760
  %v804 = vsub.f32 %v26, %v803
  %v805 = vand.u32 %v804, 4294901760
  %806 = vmatpush1.msra.mxu0 %v805
  %807 = vmatprep.subr.mxu0 0.0
  %v808 = vand.u32 %v27, 4294901760
  %v809 = vsub.f32 %v27, %v808
  %v810 = vand.u32 %v809, 4294901760
  %811 = vmatpush1.msra.mxu0 %v810
  %812 = vmatprep.subr.mxu0 0.0
  %v813 = vand.u32 %v28, 4294901760
  %v814 = vsub.f32 %v28, %v813
  %v815 = vand.u32 %v814, 4294901760
  %816 = vmatpush1.msra.mxu0 %v815
  %817 = vmatprep.subr.mxu0 0.0
  %v818 = vand.u32 %v29, 4294901760
  %v819 = vsub.f32 %v29, %v818
  %v820 = vand.u32 %v819, 4294901760
  %821 = vmatpush1.msra.mxu0 %v820
  %822 = vmatprep.subr.mxu0 0.0
  %v823 = vand.u32 %v30, 4294901760
  %v824 = vsub.f32 %v30, %v823
  %v825 = vand.u32 %v824, 4294901760
  %826 = vmatpush1.msra.mxu0 %v825
  %827 = vmatprep.subr.mxu0 0.0
  %v828 = vand.u32 %v31, 4294901760
  %v829 = vsub.f32 %v31, %v828
  %v830 = vand.u32 %v829, 4294901760
  %831 = vmatpush1.msra.mxu0 %v830
  %832 = vmatprep.subr.mxu0 0.0
  %v833 = vand.u32 %v32, 4294901760
  %v834 = vsub.f32 %v32, %v833
  %v835 = vand.u32 %v834, 4294901760
  %836 = vmatpush1.msra.mxu0 %v835
  %837 = vmatprep.subr.mxu0 0.0
  %v838 = vand.u32 %v33, 4294901760
  %v839 = vsub.f32 %v33, %v838
  %v840 = vand.u32 %v839, 4294901760
  %841 = vmatpush1.msra.mxu0 %v840
  %842 = vmatprep.subr.mxu0 0.0
  %v843 = vand.u32 %v34, 4294901760
  %v844 = vsub.f32 %v34, %v843
  %v845 = vand.u32 %v844, 4294901760
  %846 = vmatpush1.msra.mxu0 %v845
  %847 = vmatprep.subr.mxu0 0.0
  %v848 = vand.u32 %v35, 4294901760
  %v849 = vsub.f32 %v35, %v848
  %v850 = vand.u32 %v849, 4294901760
  %851 = vmatpush1.msra.mxu0 %v850
  %852 = vmatprep.subr.mxu0 0.0
  %v853 = vand.u32 %v36, 4294901760
  %v854 = vsub.f32 %v36, %v853
  %v855 = vand.u32 %v854, 4294901760
  %856 = vmatpush1.msra.mxu0 %v855
  %857 = vmatprep.subr.mxu0 0.0
  %v858 = vand.u32 %v37, 4294901760
  %v859 = vsub.f32 %v37, %v858
  %v860 = vand.u32 %v859, 4294901760
  %861 = vmatpush1.msra.mxu0 %v860
  %862 = vmatprep.subr.mxu0 0.0
  %v863 = vand.u32 %v38, 4294901760
  %v864 = vsub.f32 %v38, %v863
  %v865 = vand.u32 %v864, 4294901760
  %866 = vmatpush1.msra.mxu0 %v865
  %867 = vmatprep.subr.mxu0 0.0
  %v868 = vand.u32 %v39, 4294901760
  %v869 = vsub.f32 %v39, %v868
  %v870 = vand.u32 %v869, 4294901760
  %871 = vmatpush1.msra.mxu0 %v870
  %872 = vmatprep.subr.mxu0 0.0
  %v873 = vand.u32 %v40, 4294901760
  %v874 = vsub.f32 %v40, %v873
  %v875 = vand.u32 %v874, 4294901760
  %876 = vmatpush1.msra.mxu0 %v875
  %877 = vmatprep.subr.mxu0 0.0
  %v878 = vand.u32 %v41, 4294901760
  %v879 = vsub.f32 %v41, %v878
  %v880 = vand.u32 %v879, 4294901760
  %881 = vmatpush1.msra.mxu0 %v880
  %882 = vmatprep.subr.mxu0 0.0
  %v883 = vand.u32 %v42, 4294901760
  %v884 = vsub.f32 %v42, %v883
  %v885 = vand.u32 %v884, 4294901760
  %886 = vmatpush1.msra.mxu0 %v885
  %887 = vmatprep.subr.mxu0 0.0
  %v888 = vand.u32 %v43, 4294901760
  %v889 = vsub.f32 %v43, %v888
  %v890 = vand.u32 %v889, 4294901760
  %891 = vmatpush1.msra.mxu0 %v890
  %892 = vmatprep.subr.mxu0 0.0
  %v893 = vand.u32 %v44, 4294901760
  %v894 = vsub.f32 %v44, %v893
  %v895 = vand.u32 %v894, 4294901760
  %896 = vmatpush1.msra.mxu0 %v895
  %897 = vmatprep.subr.mxu0 0.0
  %v898 = vand.u32 %v45, 4294901760
  %v899 = vsub.f32 %v45, %v898
  %v900 = vand.u32 %v899, 4294901760
  %901 = vmatpush1.msra.mxu0 %v900
  %902 = vmatprep.subr.mxu0 0.0
  %v903 = vand.u32 %v46, 4294901760
  %v904 = vsub.f32 %v46, %v903
  %v905 = vand.u32 %v904, 4294901760
  %906 = vmatpush1.msra.mxu0 %v905
  %907 = vmatprep.subr.mxu0 0.0
  %v908 = vand.u32 %v47, 4294901760
  %v909 = vsub.f32 %v47, %v908
  %v910 = vand.u32 %v909, 4294901760
  %911 = vmatpush1.msra.mxu0 %v910
  %912 = vmatprep.subr.mxu0 0.0
  %v913 = vand.u32 %v48, 4294901760
  %v914 = vsub.f32 %v48, %v913
  %v915 = vand.u32 %v914, 4294901760
  %916 = vmatpush1.msra.mxu0 %v915
  %917 = vmatprep.subr.mxu0 0.0
  %v918 = vand.u32 %v49, 4294901760
  %v919 = vsub.f32 %v49, %v918
  %v920 = vand.u32 %v919, 4294901760
  %921 = vmatpush1.msra.mxu0 %v920
  %922 = vmatprep.subr.mxu0 0.0
  %v923 = vand.u32 %v50, 4294901760
  %v924 = vsub.f32 %v50, %v923
  %v925 = vand.u32 %v924, 4294901760
  %926 = vmatpush1.msra.mxu0 %v925
  %v927 = vand.u32 %v12, 4294901760
  %928 = vmatprep.mubr.f32.mxu0 %v927
  %v929 = vand.u32 %v11, 4294901760
  %930 = vmatmul.mubr.f32.gmra.mrb[0].mxu0 %v929
  %v931 = vpop.f32.mrb[0].mxu0
  %v932 = vadd.f32 %v731, %v931
  %v933 = vpop.f32.mrb[0].mxu0
  %v934 = vand.u32 %v14, 4294901760
  %935 = vmatprep.mubr.f32.mxu0 %v934
  %v936 = vand.u32 %v13, 4294901760
  %937 = vmatmul.mubr.f32.gmra.mrb[0].mxu0 %v936
  %v938 = vpop.f32.mrb[0].mxu0
  %v939 = vadd.f32 %v742, %v938
  %v940 = vpop.f32.mrb[0].mxu0
  %v941 = vand.u32 %v16, 4294901760
  %942 = vmatprep.mubr.f32.mxu0 %v941
  %v943 = vand.u32 %v15, 4294901760
  %944 = vmatmul.mubr.f32.gmra.mrb[0].mxu0 %v943
  %v945 = vpop.f32.mrb[0].mxu0
  %v946 = vadd.f32 %v753, %v945
  %v947 = vpop.f32.mrb[0].mxu0
  %v948 = vand.u32 %v18, 4294901760
  %949 = vmatprep.mubr.f32.mxu0 %v948
  %v950 = vand.u32 %v17, 4294901760
  %951 = vmatmul.mubr.f32.gmra.mrb[0].mxu0 %v950
  %v952 = vpop.f32.mrb[0].mxu0
  %v953 = vadd.f32 %v764, %v952
  %v954 = vpop.f32.mrb[0].mxu0
  %955 = vdwg.mxu0
  %956 = vmatprep.subr.mxu0 0.0
  %v957 = vand.u32 %v19, 4294901760
  %958 = vmatpush1.msra.mxu0 %v957
  %959 = vmatprep.subr.mxu0 0.0
  %v960 = vand.u32 %v20, 4294901760
  %961 = vmatpush1.msra.mxu0 %v960
  %962 = vmatprep.subr.mxu0 0.0
  %v963 = vand.u32 %v21, 4294901760
  %964 = vmatpush1.msra.mxu0 %v963
  %965 = vmatprep.subr.mxu0 0.0
  %v966 = vand.u32 %v22, 4294901760
  %967 = vmatpush1.msra.mxu0 %v966
  %968 = vmatprep.subr.mxu0 0.0
  %v969 = vand.u32 %v23, 4294901760
  %970 = vmatpush1.msra.mxu0 %v969
  %971 = vmatprep.subr.mxu0 0.0
  %v972 = vand.u32 %v24, 4294901760
  %973 = vmatpush1.msra.mxu0 %v972
  %974 = vmatprep.subr.mxu0 0.0
  %v975 = vand.u32 %v25, 4294901760
  %976 = vmatpush1.msra.mxu0 %v975
  %977 = vmatprep.subr.mxu0 0.0
  %v978 = vand.u32 %v26, 4294901760
  %979 = vmatpush1.msra.mxu0 %v978
  %980 = vmatprep.subr.mxu0 0.0
  %v981 = vand.u32 %v27, 4294901760
  %982 = vmatpush1.msra.mxu0 %v981
  %983 = vmatprep.subr.mxu0 0.0
  %v984 = vand.u32 %v28, 4294901760
  %985 = vmatpush1.msra.mxu0 %v984
  %986 = vmatprep.subr.mxu0 0.0
  %v987 = vand.u32 %v29, 4294901760
  %988 = vmatpush1.msra.mxu0 %v987
  %989 = vmatprep.subr.mxu0 0.0
  %v990 = vand.u32 %v30, 4294901760
  %991 = vmatpush1.msra.mxu0 %v990
  %992 = vmatprep.subr.mxu0 0.0
  %v993 = vand.u32 %v31, 4294901760
  %994 = vmatpush1.msra.mxu0 %v993
  %995 = vmatprep.subr.mxu0 0.0
  %v996 = vand.u32 %v32, 4294901760
  %997 = vmatpush1.msra.mxu0 %v996
  %998 = vmatprep.subr.mxu0 0.0
  %v999 = vand.u32 %v33, 4294901760
  %1000 = vmatpush1.msra.mxu0 %v999
  %1001 = vmatprep.subr.mxu0 0.0
  %v1002 = vand.u32 %v34, 4294901760
  %1003 = vmatpush1.msra.mxu0 %v1002
  %1004 = vmatprep.subr.mxu0 0.0
  %v1005 = vand.u32 %v35, 4294901760
  %1006 = vmatpush1.msra.mxu0 %v1005
  %1007 = vmatprep.subr.mxu0 0.0
  %v1008 = vand.u32 %v36, 4294901760
  %1009 = vmatpush1.msra.mxu0 %v1008
  %1010 = vmatprep.subr.mxu0 0.0
  %v1011 = vand.u32 %v37, 4294901760
  %1012 = vmatpush1.msra.mxu0 %v1011
  %1013 = vmatprep.subr.mxu0 0.0
  %v1014 = vand.u32 %v38, 4294901760
  %1015 = vmatpush1.msra.mxu0 %v1014
  %1016 = vmatprep.subr.mxu0 0.0
  %v1017 = vand.u32 %v39, 4294901760
  %1018 = vmatpush1.msra.mxu0 %v1017
  %1019 = vmatprep.subr.mxu0 0.0
  %v1020 = vand.u32 %v40, 4294901760
  %1021 = vmatpush1.msra.mxu0 %v1020
  %1022 = vmatprep.subr.mxu0 0.0
  %v1023 = vand.u32 %v41, 4294901760
  %1024 = vmatpush1.msra.mxu0 %v1023
  %1025 = vmatprep.subr.mxu0 0.0
  %v1026 = vand.u32 %v42, 4294901760
  %1027 = vmatpush1.msra.mxu0 %v1026
  %1028 = vmatprep.subr.mxu0 0.0
  %v1029 = vand.u32 %v43, 4294901760
  %1030 = vmatpush1.msra.mxu0 %v1029
  %1031 = vmatprep.subr.mxu0 0.0
  %v1032 = vand.u32 %v44, 4294901760
  %1033 = vmatpush1.msra.mxu0 %v1032
  %1034 = vmatprep.subr.mxu0 0.0
  %v1035 = vand.u32 %v45, 4294901760
  %1036 = vmatpush1.msra.mxu0 %v1035
  %1037 = vmatprep.subr.mxu0 0.0
  %v1038 = vand.u32 %v46, 4294901760
  %1039 = vmatpush1.msra.mxu0 %v1038
  %1040 = vmatprep.subr.mxu0 0.0
  %v1041 = vand.u32 %v47, 4294901760
  %1042 = vmatpush1.msra.mxu0 %v1041
  %1043 = vmatprep.subr.mxu0 0.0
  %v1044 = vand.u32 %v48, 4294901760
  %1045 = vmatpush1.msra.mxu0 %v1044
  %1046 = vmatprep.subr.mxu0 0.0
  %v1047 = vand.u32 %v49, 4294901760
  %1048 = vmatpush1.msra.mxu0 %v1047
  %1049 = vmatprep.subr.mxu0 0.0
  %v1050 = vand.u32 %v50, 4294901760
  %1051 = vmatpush1.msra.mxu0 %v1050
  %v1052 = vand.u32 %v12, 4294901760
  %1053 = vmatprep.mubr.f32.mxu0 %v1052
  %v1054 = vand.u32 %v11, 4294901760
  %1055 = vmatmul.mubr.f32.gmra.mrb[0].mxu0 %v1054
  %v1056 = vpop.f32.mrb[0].mxu0
  %v1057 = vadd.f32 %v932, %v1056
  %v1058 = vpop.f32.mrb[0].mxu0
  %v1059 = vand.u32 %v14, 4294901760
  %1060 = vmatprep.mubr.f32.mxu0 %v1059
  %v1061 = vand.u32 %v13, 4294901760
  %1062 = vmatmul.mubr.f32.gmra.mrb[0].mxu0 %v1061
  %v1063 = vpop.f32.mrb[0].mxu0
  %v1064 = vadd.f32 %v939, %v1063
  %v1065 = vpop.f32.mrb[0].mxu0
  %v1066 = vand.u32 %v16, 4294901760
  %1067 = vmatprep.mubr.f32.mxu0 %v1066
  %v1068 = vand.u32 %v15, 4294901760
  %1069 = vmatmul.mubr.f32.gmra.mrb[0].mxu0 %v1068
  %v1070 = vpop.f32.mrb[0].mxu0
  %v1071 = vadd.f32 %v946, %v1070
  %v1072 = vpop.f32.mrb[0].mxu0
  %v1073 = vand.u32 %v18, 4294901760
  %1074 = vmatprep.mubr.f32.mxu0 %v1073
  %v1075 = vand.u32 %v17, 4294901760
  %1076 = vmatmul.mubr.f32.gmra.mrb[0].mxu0 %v1075
  %v1077 = vpop.f32.mrb[0].mxu0
  %v1078 = vadd.f32 %v953, %v1077
  %v1079 = vpop.f32.mrb[0].mxu0
  %1080 = vdwg.mxu0
  %vm1081 = vcmask 130048
  %1082 = vst.msk [vmem:[%s2] sm:$0xff] %vm1081, %v1057
  %1083 = vst.msk [vmem:[%s2 + $0x8] sm:$0xff] %vm1081, %v1064
  %1084 = vst.msk [vmem:[%s2 + $0x10] sm:$0xff] %vm1081, %v1071
  %1085 = vst.msk [vmem:[%s2 + $0x18] sm:$0xff] %vm1081, %v1078
  // Predicated region
  $region10: #{tpu_custom_call.1} parent=0 // pred_check
    _
  $region11: #{tpu_custom_call.1} parent=0 // pred_check_branch
    %1087 = sbr.rel (0) target = $region13
  $region12: #{tpu_custom_call.1} parent=0 // pred_region
    _
  $region13: #{tpu_custom_call.1} parent=0 // pred_fallthru
    _
  // Predicated region
  $region14: #{tpu_custom_call.1} parent=0 // pred_check
    _
  $region15: #{tpu_custom_call.1} parent=0 // pred_check_branch
    %1089 = sbr.rel (0) target = $region17
  $region16: #{tpu_custom_call.1} parent=0 // pred_region
    _
  $region17: #{tpu_custom_call.1} parent=0 // pred_fallthru
    _

</llo_original>
